<compile_context>
chip_gen: v5e
topology: v5e:2x2
jax: 0.10.0
libtpu: 0.0.40
codegen_flags: <defaults>
</compile_context>

<pallas_src>
import jax
import jax.numpy as jnp
from jax.experimental import pallas as pl
from jax.experimental.pallas import tpu as pltpu

ROWS = 6
COLS = 7
INPUT_SIZE = ROWS * COLS      # 42
HIDDEN_SIZE = 64
OUTPUT_SIZE = COLS            # 7

HIDDEN_PAD = 128              # hidden 64 -> 128 (exact: ReLU(0)=0, zero w2 rows)
OUT_PAD = 8                   # output 7 -> 8 sublanes (row 7 is exactly zero)
MAX_TB = 8192                 # max batch tile (working set well under VMEM)

# Explicit precision decision: bf16 MXU operands with f32 accumulation.
# Logits differ from the exact f32 math by ~1e-3; use jnp.float32 for parity.
COMPUTE_DTYPE = jnp.bfloat16


def _round_up(n, m):
    return ((n + m - 1) // m) * m


def _mlp_kernel(xt_ref, w1t_ref, b1_ref, w2t_ref, b2_ref, o_ref):
    # xt_ref : (42, TB)   int8 boards, batch on lanes (cast on-chip)
    # w1t_ref: (128, 42)  compute dtype    b1_ref: (128, 1) f32
    # w2t_ref: (8, 128)   compute dtype    b2_ref: (8, 1)   f32
    # o_ref  : (8, TB)    f32  (rows [:7] are the logits; row 7 is zero)
    x = xt_ref[...].astype(jnp.float32).astype(w1t_ref.dtype)      # exact for {-1,0,1}
    h = jnp.dot(w1t_ref[...], x, preferred_element_type=jnp.float32)   # (128, TB)
    h = jnp.maximum(h + b1_ref[...], 0.0)                               # bias/ReLU in f32
    out = jnp.dot(w2t_ref[...], h.astype(w2t_ref.dtype),
                  preferred_element_type=jnp.float32)                   # (8, TB)
    o_ref[...] = (out + b2_ref[...]).astype(o_ref.dtype)


def prepare_params(params, compute_dtype=COMPUTE_DTYPE):
    """Pad / transpose / cast weights once (hoisted out of the forward path).

    Input params are (w1[42,64], b1[64], w2[64,7], b2[7]).
    Returns (w1t[128,42], b1p[128,1] f32, w2t[8,128], b2p[8,1] f32).
    Padding is exact: padded hidden units are ReLU(0)=0 and feed zero columns
    of w2t; padded output row 7 is zero and is sliced off.
    """
    w1, b1, w2, b2 = params
    w1t = jnp.zeros((HIDDEN_PAD, INPUT_SIZE), compute_dtype)
    w1t = w1t.at[:HIDDEN_SIZE, :].set(w1.T.astype(compute_dtype))
    b1p = jnp.zeros((HIDDEN_PAD, 1), jnp.float32)
    b1p = b1p.at[:HIDDEN_SIZE, 0].set(b1.astype(jnp.float32))
    w2t = jnp.zeros((OUT_PAD, HIDDEN_PAD), compute_dtype)
    w2t = w2t.at[:OUTPUT_SIZE, :HIDDEN_SIZE].set(w2.T.astype(compute_dtype))
    b2p = jnp.zeros((OUT_PAD, 1), jnp.float32)
    b2p = b2p.at[:OUTPUT_SIZE, 0].set(b2.astype(jnp.float32))
    return (w1t, b1p, w2t, b2p)


def connect4_mlp_forward(x, prepared_params):
    """Forward pass matching Connect4MLP.forward.

    x: [rows, cols] or [batch, rows, cols]; ints are cast to float inside the
    kernel.  prepared_params comes from prepare_params().
    Returns logits of shape [output_size] or [batch, output_size] (float32).
    """
    w1t, b1p, w2t, b2p = prepared_params
    original_ndim = x.ndim
    if x.ndim == 2:
        x = x[None, ...]
    elif x.ndim != 3:
        raise ValueError(
            f"Input tensor should have 2 or 3 dimensions, got shape {x.shape}")

    batch = x.shape[0]
    # Feature-major: (42, batch), native dtype (e.g. int8) -> 42 B/board HBM read.
    xt = x.reshape(batch, INPUT_SIZE).T

    # Batch tile: full extent for small batches; otherwise a 128-aligned tile
    # giving >= 2 grid steps (v7x dual-TC), capped at MAX_TB.  No jnp.pad of x;
    # Pallas masks the ragged last block.
    if batch >= 512:
        tb = min(MAX_TB, _round_up(-(-batch // 2), 128))
    else:
        tb = batch
    grid = (pl.cdiv(batch, tb),)

    weight_bytes = sum(int(a.size) * a.dtype.itemsize for a in prepared_params)
    cost = pl.CostEstimate(
        flops=2 * batch * (INPUT_SIZE * HIDDEN_PAD + HIDDEN_PAD * OUT_PAD),
        transcendentals=0,
        bytes_accessed=batch * INPUT_SIZE * xt.dtype.itemsize
        + batch * OUT_PAD * 4
        + weight_bytes,
    )

    out_t = pl.pallas_call(
        _mlp_kernel,
        out_shape=jax.ShapeDtypeStruct((OUT_PAD, batch), jnp.float32),
        grid=grid,
        in_specs=[
            pl.BlockSpec((INPUT_SIZE, tb), lambda i: (0, i)),          # streamed boards
            pl.BlockSpec((HIDDEN_PAD, INPUT_SIZE), lambda i: (0, 0)),  # resident weights
            pl.BlockSpec((HIDDEN_PAD, 1), lambda i: (0, 0)),
            pl.BlockSpec((OUT_PAD, HIDDEN_PAD), lambda i: (0, 0)),
            pl.BlockSpec((OUT_PAD, 1), lambda i: (0, 0)),
        ],
        out_specs=pl.BlockSpec((OUT_PAD, tb), lambda i: (0, i)),       # lane-dense store
        compiler_params=pltpu.CompilerParams(
            dimension_semantics=("parallel",)),
        cost_estimate=cost,
    )(xt, w1t, b1p, w2t, b2p)

    out = out_t[:OUTPUT_SIZE, :].T          # (batch, 7)
    if original_ndim == 2:
        out = out[0]
    return out


def init_params(key):
    """Deterministic init mimicking torch.nn.Linear defaults
    (uniform(-1/sqrt(fan_in), 1/sqrt(fan_in))).  Weights stored as [in, out]."""
    k1, k2, k3, k4 = jax.random.split(key, 4)
    bound1 = 1.0 / jnp.sqrt(float(INPUT_SIZE))
    bound2 = 1.0 / jnp.sqrt(float(HIDDEN_SIZE))
    w1 = jax.random.uniform(k1, (INPUT_SIZE, HIDDEN_SIZE), jnp.float32,
                            minval=-bound1, maxval=bound1)
    b1 = jax.random.uniform(k2, (HIDDEN_SIZE,), jnp.float32,
                            minval=-bound1, maxval=bound1)
    w2 = jax.random.uniform(k3, (HIDDEN_SIZE, OUTPUT_SIZE), jnp.float32,
                            minval=-bound2, maxval=bound2)
    b2 = jax.random.uniform(k4, (OUTPUT_SIZE,), jnp.float32,
                            minval=-bound2, maxval=bound2)
    return (w1, b1, w2, b2)


if __name__ == "__main__":
    key = jax.random.PRNGKey(0)
    pkey, xkey = jax.random.split(key)
    params = init_params(pkey)
    prepared = prepare_params(params)      # hoisted out of the per-call path
    w1, b1, w2, b2 = params

    def ref_f32(boards):
        xf = boards.astype(jnp.float32).reshape(boards.shape[0], -1)
        return jnp.maximum(xf @ w1 + b1, 0.0) @ w2 + b2

    def ref_bf16(boards):
        # Mirrors the kernel's precision choices (bf16 operands, f32 accumulate).
        xb = boards.astype(jnp.float32).reshape(boards.shape[0], -1).astype(jnp.bfloat16)
        h = jnp.dot(xb, w1.astype(jnp.bfloat16),
                    preferred_element_type=jnp.float32) + b1
        h = jnp.maximum(h, 0.0).astype(jnp.bfloat16)
        return jnp.dot(h, w2.astype(jnp.bfloat16),
                       preferred_element_type=jnp.float32) + b2

    # Small deterministic board batch: values in {-1, 0, 1}, int8.
    batch = 2
    x = jax.random.randint(xkey, (batch, ROWS, COLS), minval=-1, maxval=2,
                           dtype=jnp.int32).astype(jnp.int8)
    logits = jax.block_until_ready(connect4_mlp_forward(x, prepared))
    assert logits.shape == (batch, OUTPUT_SIZE)
    assert jnp.allclose(logits, ref_bf16(x), atol=5e-3)
    assert jnp.allclose(logits, ref_f32(x), atol=1e-1)   # bf16 operand tolerance

    # Unbatched (2-D) path, matching the squeeze semantics.
    single = jax.block_until_ready(connect4_mlp_forward(x[0], prepared))
    assert single.shape == (OUTPUT_SIZE,)
    assert jnp.allclose(single, ref_bf16(x)[0], atol=5e-3)

    # Non-aligned small batch (single full-extent tile).
    batch2 = 100
    x2 = jax.random.randint(jax.random.PRNGKey(7), (batch2, ROWS, COLS),
                            minval=-1, maxval=2, dtype=jnp.int32).astype(jnp.int8)
    out2 = jax.block_until_ready(connect4_mlp_forward(x2, prepared))
    assert out2.shape == (batch2, OUTPUT_SIZE)
    assert jnp.allclose(out2, ref_bf16(x2), atol=5e-3)
    assert jnp.allclose(out2, ref_f32(x2), atol=1e-1)

    # Larger batch: multi-step grid + ragged last block (dual-TC path on v7x).
    batch3 = 1000
    x3 = jax.random.randint(jax.random.PRNGKey(11), (batch3, ROWS, COLS),
                            minval=-1, maxval=2, dtype=jnp.int32).astype(jnp.int8)
    out3 = jax.block_until_ready(connect4_mlp_forward(x3, prepared))
    assert out3.shape == (batch3, OUTPUT_SIZE)
    assert jnp.allclose(out3, ref_bf16(x3), atol=5e-3)
    assert jnp.allclose(out3, ref_f32(x3), atol=1e-1)

    print("KERNEL_OK")
</pallas_src>

<mosaic_0001>
module attributes {stable_mosaic.version = 11 : i64} {
  func.func @_mlp_kernel(%arg0: i32, %arg1: memref<42x2xi8, #tpu.memory_space<vmem>>, %arg2: memref<128x42xbf16, #tpu.memory_space<vmem>>, %arg3: memref<128x1xf32, #tpu.memory_space<vmem>>, %arg4: memref<8x128xbf16, #tpu.memory_space<vmem>>, %arg5: memref<8x1xf32, #tpu.memory_space<vmem>>, %arg6: memref<8x2xf32, #tpu.memory_space<vmem>>) attributes {dimension_semantics = [#tpu.dimension_semantics<parallel>], iteration_bounds = array<i64: 1>, scalar_prefetch = 0 : i64, scratch_operands = 0 : i64, tpu.core_type = #tpu.core_type<tc>, window_params = [{transform_indices = @transform_0, window_bounds = array<i64: 42, 2>}, {pipeline_mode = #tpu.pipeline_mode<synchronous>, transform_indices = @transform_1, window_bounds = array<i64: 128, 42>}, {pipeline_mode = #tpu.pipeline_mode<synchronous>, transform_indices = @transform_2, window_bounds = array<i64: 128, 1>}, {pipeline_mode = #tpu.pipeline_mode<synchronous>, transform_indices = @transform_3, window_bounds = array<i64: 8, 128>}, {pipeline_mode = #tpu.pipeline_mode<synchronous>, transform_indices = @transform_4, window_bounds = array<i64: 8, 1>}, {transform_indices = @transform_5, window_bounds = array<i64: 8, 2>}]} {
    %c0 = arith.constant 0 : index
    %c0_0 = arith.constant 0 : index
    %0 = vector.load %arg1[%c0, %c0_0] : memref<42x2xi8, #tpu.memory_space<vmem>>, vector<42x2xi8>
    %1 = arith.sitofp %0 : vector<42x2xi8> to vector<42x2xf32>
    %2 = arith.truncf %1 : vector<42x2xf32> to vector<42x2xbf16>
    %c0_1 = arith.constant 0 : index
    %c0_2 = arith.constant 0 : index
    %3 = vector.load %arg2[%c0_1, %c0_2] : memref<128x42xbf16, #tpu.memory_space<vmem>>, vector<128x42xbf16>
    %cst = arith.constant dense<0.000000e+00> : vector<128x2xf32>
    %4 = tpu.matmul %3, %2, %cst {dimension_numbers = #tpu.dot_dimension_numbers<[1], [0], [0], [1], [0, 0, 1, 1], [], []>} : vector<128x42xbf16>, vector<42x2xbf16>, vector<128x2xf32> -> vector<128x2xf32>
    %c0_3 = arith.constant 0 : index
    %c0_4 = arith.constant 0 : index
    %5 = vector.load %arg3[%c0_3, %c0_4] : memref<128x1xf32, #tpu.memory_space<vmem>>, vector<128x1xf32>
    %6 = vector.broadcast %5 : vector<128x1xf32> to vector<128x2xf32>
    %7 = arith.addf %4, %6 : vector<128x2xf32>
    %cst_5 = arith.constant 0.000000e+00 : f32
    %8 = vector.broadcast %cst_5 : f32 to vector<128x2xf32>
    %9 = arith.maximumf %7, %8 : vector<128x2xf32>
    %c0_6 = arith.constant 0 : index
    %c0_7 = arith.constant 0 : index
    %10 = vector.load %arg4[%c0_6, %c0_7] : memref<8x128xbf16, #tpu.memory_space<vmem>>, vector<8x128xbf16>
    %11 = arith.truncf %9 : vector<128x2xf32> to vector<128x2xbf16>
    %cst_8 = arith.constant dense<0.000000e+00> : vector<8x2xf32>
    %12 = tpu.matmul %10, %11, %cst_8 {dimension_numbers = #tpu.dot_dimension_numbers<[1], [0], [0], [1], [0, 0, 1, 1], [], []>} : vector<8x128xbf16>, vector<128x2xbf16>, vector<8x2xf32> -> vector<8x2xf32>
    %c0_9 = arith.constant 0 : index
    %c0_10 = arith.constant 0 : index
    %13 = vector.load %arg5[%c0_9, %c0_10] : memref<8x1xf32, #tpu.memory_space<vmem>>, vector<8x1xf32>
    %14 = vector.broadcast %13 : vector<8x1xf32> to vector<8x2xf32>
    %15 = arith.addf %12, %14 : vector<8x2xf32>
    %c0_11 = arith.constant 0 : index
    %c0_12 = arith.constant 0 : index
    %16 = vector.load %arg6[%c0_11, %c0_12] : memref<8x2xf32, #tpu.memory_space<vmem>>, vector<8x2xf32>
    tpu.vector_store %arg6[%c0_11, %c0_12], %15 {strides = array<i32>} : memref<8x2xf32, #tpu.memory_space<vmem>>, vector<8x2xf32>,
    return
  }
  func.func @transform_0(%arg0: i32) -> (i32, i32) {
    %c0_i32 = arith.constant 0 : i32
    %c0_i32_0 = arith.constant 0 : i32
    return %c0_i32, %arg0 : i32, i32
  }
  func.func @transform_1(%arg0: i32) -> (i32, i32) {
    %c0_i32 = arith.constant 0 : i32
    %c0_i32_0 = arith.constant 0 : i32
    %c0_i32_1 = arith.constant 0 : i32
    return %c0_i32, %c0_i32_0 : i32, i32
  }
  func.func @transform_2(%arg0: i32) -> (i32, i32) {
    %c0_i32 = arith.constant 0 : i32
    %c0_i32_0 = arith.constant 0 : i32
    %c0_i32_1 = arith.constant 0 : i32
    return %c0_i32, %c0_i32_0 : i32, i32
  }
  func.func @transform_3(%arg0: i32) -> (i32, i32) {
    %c0_i32 = arith.constant 0 : i32
    %c0_i32_0 = arith.constant 0 : i32
    %c0_i32_1 = arith.constant 0 : i32
    return %c0_i32, %c0_i32_0 : i32, i32
  }
  func.func @transform_4(%arg0: i32) -> (i32, i32) {
    %c0_i32 = arith.constant 0 : i32
    %c0_i32_0 = arith.constant 0 : i32
    %c0_i32_1 = arith.constant 0 : i32
    return %c0_i32, %c0_i32_0 : i32, i32
  }
  func.func @transform_5(%arg0: i32) -> (i32, i32) {
    %c0_i32 = arith.constant 0 : i32
    %c0_i32_0 = arith.constant 0 : i32
    return %c0_i32, %arg0 : i32, i32
  }
}

</mosaic_0001>

<llo_original>
// kernel: tpu_custom_call.1
$region0: #{tpu_custom_call.1}
  #allocation0 [shape = 'u32[]', space=smem, size = 0x4, offset = 0x4, fixed_abs, tag = 'smem constant byte address 0x4 - core index']
  #allocation1 [shape = 'u32[72,128]{1,0:T(1,128)}', space=vmem, size = 0x9000, scoped, tag = 'internal scratch']
  %s0 = inlined_call_operand.vmem [shape: s8[42,2], index: 0, kind: input, shape index: {}]
  %s1 = inlined_call_operand.vmem [shape: bf16[128,42], index: 1, kind: input, shape index: {}]
  %s2 = inlined_call_operand.vmem [shape: f32[128,1], index: 2, kind: input, shape index: {}]
  %s3 = inlined_call_operand.vmem [shape: bf16[8,128], index: 3, kind: input, shape index: {}]
  %s4 = inlined_call_operand.vmem [shape: f32[8,1], index: 4, kind: input, shape index: {}]
  %s5 = inlined_call_operand.vmem [shape: f32[8,2], index: 5, kind: output, shape index: {}]
  %s6 = sld [smem:[#allocation0]]
  $region30: #{tpu_custom_call.1} parent=0
    _
  %s8 = ssub.s32 1, %s6
  %s9 = scalar_select 0, %s8, %s6
  // Predicated region
  $region2: #{tpu_custom_call.1} parent=0 // pred_check
    _
  $region3: #{tpu_custom_call.1} parent=0 // pred_check_branch
    %11 = sbr.rel (0) target = $region5
  $region4: #{tpu_custom_call.1} parent=0 // pred_region
    _
  $region5: #{tpu_custom_call.1} parent=0 // pred_fallthru
    _
  // Predicated region
  $region6: #{tpu_custom_call.1} parent=0 // pred_check
    _
  $region7: #{tpu_custom_call.1} parent=0 // pred_check_branch
    %13 = sbr.rel (0) target = $region9
  $region8: #{tpu_custom_call.1} parent=0 // pred_region
    _
  $region9: #{tpu_custom_call.1} parent=0 // pred_fallthru
    _
  // Predicated region
  $region10: #{tpu_custom_call.1} parent=0 // pred_check
    _
  $region11: #{tpu_custom_call.1} parent=0 // pred_check_branch
    %15 = sbr.rel (0) target = $region13
  $region12: #{tpu_custom_call.1} parent=0 // pred_region
    _
  $region13: #{tpu_custom_call.1} parent=0 // pred_fallthru
    _
  // Predicated region
  $region14: #{tpu_custom_call.1} parent=0 // pred_check
    _
  $region15: #{tpu_custom_call.1} parent=0 // pred_check_branch
    %17 = sbr.rel (0) target = $region17
  $region16: #{tpu_custom_call.1} parent=0 // pred_region
    _
  $region17: #{tpu_custom_call.1} parent=0 // pred_fallthru
    _
  // Predicated region
  $region18: #{tpu_custom_call.1} parent=0 // pred_check
    _
  $region19: #{tpu_custom_call.1} parent=0 // pred_check_branch
    %19 = sbr.rel (0) target = $region21
  $region20: #{tpu_custom_call.1} parent=0 // pred_region
    _
  $region21: #{tpu_custom_call.1} parent=0 // pred_fallthru
    _
  %v21 = vld [vmem:[%s0] sm:$0x3]
  %v22 = vld [vmem:[%s0 + $0x2] sm:$0x3]
  %v23 = vld [vmem:[%s0 + $0x4] sm:$0x3]
  %v24 = vld [vmem:[%s0 + $0x6] sm:$0x3]
  %v25 = vld [vmem:[%s0 + $0x8] sm:$0x3]
  %v26 = vld [vmem:[%s0 + $0xa] sm:$0x1]
  %v27 = vunpack.c.0.s8 %v21
  %v28 = vunpack.c.0.s8 %v22
  %v29 = vunpack.c.0.s8 %v23
  %v30 = vunpack.c.0.s8 %v24
  %v31 = vunpack.c.0.s8 %v25
  %v32 = vunpack.c.0.s8 %v26
  %v33 = vcvt.s32.f32 %v27
  %v34 = vcvt.s32.f32 %v28
  %v35 = vcvt.s32.f32 %v29
  %v36 = vcvt.s32.f32 %v30
  %v37 = vcvt.s32.f32 %v31
  %v38 = vcvt.s32.f32 %v32
  %v39 = vpack.c.bf16 %v34, %v33
  %v40 = vpack.c.bf16 %v36, %v35
  %v41 = vpack.c.bf16 %v38, %v37
  %v42 = vld [vmem:[%s1] sm:$0xf]
  %v43 = vld [vmem:[%s1 + $0x4] sm:$0xf]
  %v44 = vld [vmem:[%s1 + $0x8] sm:$0xf]
  %v45 = vld [vmem:[%s1 + $0xc] sm:$0xf]
  %v46 = vld [vmem:[%s1 + $0x10] sm:$0xf]
  %v47 = vld [vmem:[%s1 + $0x14] sm:$0xf]
  %v48 = vld [vmem:[%s1 + $0x18] sm:$0xf]
  %v49 = vld [vmem:[%s1 + $0x1c] sm:$0xf]
  %v50 = vld [vmem:[%s1 + $0x20] sm:$0xf]
  %v51 = vld [vmem:[%s1 + $0x24] sm:$0xf]
  %v52 = vld [vmem:[%s1 + $0x28] sm:$0xf]
  %v53 = vld [vmem:[%s1 + $0x2c] sm:$0xf]
  %v54 = vld [vmem:[%s1 + $0x30] sm:$0xf]
  %v55 = vld [vmem:[%s1 + $0x34] sm:$0xf]
  %v56 = vld [vmem:[%s1 + $0x38] sm:$0xf]
  %v57 = vld [vmem:[%s1 + $0x3c] sm:$0xf]
  %v58 = vld [vmem:[%s2] sm:$0xff]
  %v59 = vld [vmem:[%s2 + $0x8] sm:$0xff]
  %v60 = vld [vmem:[%s2 + $0x10] sm:$0xff]
  %v61 = vld [vmem:[%s2 + $0x18] sm:$0xff]
  %v62 = vld [vmem:[%s2 + $0x20] sm:$0xff]
  %v63 = vld [vmem:[%s2 + $0x28] sm:$0xff]
  %v64 = vld [vmem:[%s2 + $0x30] sm:$0xff]
  %v65 = vld [vmem:[%s2 + $0x38] sm:$0xff]
  %v66 = vld [vmem:[%s2 + $0x40] sm:$0xff]
  %v67 = vld [vmem:[%s2 + $0x48] sm:$0xff]
  %v68 = vld [vmem:[%s2 + $0x50] sm:$0xff]
  %v69 = vld [vmem:[%s2 + $0x58] sm:$0xff]
  %v70 = vld [vmem:[%s2 + $0x60] sm:$0xff]
  %v71 = vld [vmem:[%s2 + $0x68] sm:$0xff]
  %v72 = vld [vmem:[%s2 + $0x70] sm:$0xff]
  %v73 = vld [vmem:[%s2 + $0x78] sm:$0xff]
  %75 = vset.pattern.permute.xlu0 0
  %76 = vperm.xlu0 %75, %v58
  %v77 = vpop.permute.xlu0 %76
  %80 = vset.pattern.permute.xlu0 0
  %81 = vperm.xlu0 %80, %v59
  %v82 = vpop.permute.xlu0 %81
  %85 = vset.pattern.permute.xlu0 0
  %86 = vperm.xlu0 %85, %v60
  %v87 = vpop.permute.xlu0 %86
  %90 = vset.pattern.permute.xlu0 0
  %91 = vperm.xlu0 %90, %v61
  %v92 = vpop.permute.xlu0 %91
  %95 = vset.pattern.permute.xlu0 0
  %96 = vperm.xlu0 %95, %v62
  %v97 = vpop.permute.xlu0 %96
  %100 = vset.pattern.permute.xlu0 0
  %101 = vperm.xlu0 %100, %v63
  %v102 = vpop.permute.xlu0 %101
  %105 = vset.pattern.permute.xlu0 0
  %106 = vperm.xlu0 %105, %v64
  %v107 = vpop.permute.xlu0 %106
  %110 = vset.pattern.permute.xlu0 0
  %111 = vperm.xlu0 %110, %v65
  %v112 = vpop.permute.xlu0 %111
  %115 = vset.pattern.permute.xlu0 0
  %116 = vperm.xlu0 %115, %v66
  %v117 = vpop.permute.xlu0 %116
  %120 = vset.pattern.permute.xlu0 0
  %121 = vperm.xlu0 %120, %v67
  %v122 = vpop.permute.xlu0 %121
  %125 = vset.pattern.permute.xlu0 0
  %126 = vperm.xlu0 %125, %v68
  %v127 = vpop.permute.xlu0 %126
  %130 = vset.pattern.permute.xlu0 0
  %131 = vperm.xlu0 %130, %v69
  %v132 = vpop.permute.xlu0 %131
  %135 = vset.pattern.permute.xlu0 0
  %136 = vperm.xlu0 %135, %v70
  %v137 = vpop.permute.xlu0 %136
  %140 = vset.pattern.permute.xlu0 0
  %141 = vperm.xlu0 %140, %v71
  %v142 = vpop.permute.xlu0 %141
  %145 = vset.pattern.permute.xlu0 0
  %146 = vperm.xlu0 %145, %v72
  %v147 = vpop.permute.xlu0 %146
  %150 = vset.pattern.permute.xlu0 0
  %151 = vperm.xlu0 %150, %v73
  %v152 = vpop.permute.xlu0 %151
  %v170 = vunpack.c.l.b16 %v42
  %v171 = vunpack.c.l.b16 %v43
  %v172 = vunpack.c.l.b16 %v44
  %v173 = vunpack.c.l.b16 %v45
  %v174 = vunpack.c.l.b16 %v46
  %v175 = vunpack.c.l.b16 %v47
  %v176 = vunpack.c.l.b16 %v48
  %v177 = vunpack.c.l.b16 %v49
  %v178 = vunpack.c.l.b16 %v50
  %v179 = vunpack.c.l.b16 %v51
  %v180 = vunpack.c.l.b16 %v52
  %v181 = vunpack.c.l.b16 %v53
  %v182 = vunpack.c.l.b16 %v54
  %v183 = vunpack.c.l.b16 %v55
  %v184 = vunpack.c.l.b16 %v56
  %v185 = vunpack.c.l.b16 %v57
  %v186 = vpack.c.b16 %v171, %v170
  %v187 = vpack.c.b16 %v173, %v172
  %v188 = vpack.c.b16 %v175, %v174
  %v189 = vpack.c.b16 %v177, %v176
  %v190 = vpack.c.b16 %v179, %v178
  %v191 = vpack.c.b16 %v181, %v180
  %v192 = vpack.c.b16 %v183, %v182
  %v193 = vpack.c.b16 %v185, %v184
  %vm194 = vcmask 343040
  %v196 = vsel %vm194, %v186, 0
  %v199 = vsel %vm194, %v187, 0
  %v202 = vsel %vm194, %v188, 0
  %v205 = vsel %vm194, %v189, 0
  %v208 = vsel %vm194, %v190, 0
  %v211 = vsel %vm194, %v191, 0
  %v214 = vsel %vm194, %v192, 0
  %v217 = vsel %vm194, %v193, 0
  %vm219 = vcmask 1044480
  %v221 = vsel %vm219, %v41, 0
  %223 = vmatpush.bf16.msra.mxu0 0
  %224 = vmatpush.bf16.msra.mxu0 0
  %225 = vmatpush.bf16.msra.mxu0 0
  %226 = vmatpush.bf16.msra.mxu0 0
  %227 = vmatpush.bf16.msra.mxu0 0
  %228 = vmatpush.bf16.msra.mxu0 %v221
  %229 = vmatpush.bf16.msra.mxu0 %v40
  %230 = vmatpush.bf16.msra.mxu0 %v39
  %231 = vmatmul.bf16.gmra.mxu0 %v196
  %v232 = vpop.f32.mrf.mxu0
  %v233 = vadd.f32 %v77, %v232
  %v234 = vpop.f32.mrf.mxu0
  %v235 = vadd.f32 %v82, %v234
  %236 = vmatmul.bf16.gmra.mxu0 %v199
  %v237 = vpop.f32.mrf.mxu0
  %v238 = vadd.f32 %v87, %v237
  %v239 = vpop.f32.mrf.mxu0
  %v240 = vadd.f32 %v92, %v239
  %241 = vmatmul.bf16.gmra.mxu0 %v202
  %v242 = vpop.f32.mrf.mxu0
  %v243 = vadd.f32 %v97, %v242
  %v244 = vpop.f32.mrf.mxu0
  %v245 = vadd.f32 %v102, %v244
  %246 = vmatmul.bf16.gmra.mxu0 %v205
  %v247 = vpop.f32.mrf.mxu0
  %v248 = vadd.f32 %v107, %v247
  %v249 = vpop.f32.mrf.mxu0
  %v250 = vadd.f32 %v112, %v249
  %251 = vmatmul.bf16.gmra.mxu0 %v208
  %v252 = vpop.f32.mrf.mxu0
  %v253 = vadd.f32 %v117, %v252
  %v254 = vpop.f32.mrf.mxu0
  %v255 = vadd.f32 %v122, %v254
  %256 = vmatmul.bf16.gmra.mxu0 %v211
  %v257 = vpop.f32.mrf.mxu0
  %v258 = vadd.f32 %v127, %v257
  %v259 = vpop.f32.mrf.mxu0
  %v260 = vadd.f32 %v132, %v259
  %261 = vmatmul.bf16.gmra.mxu0 %v214
  %v262 = vpop.f32.mrf.mxu0
  %v263 = vadd.f32 %v137, %v262
  %v264 = vpop.f32.mrf.mxu0
  %v265 = vadd.f32 %v142, %v264
  %266 = vmatmul.bf16.gmra.mxu0 %v217
  %v267 = vpop.f32.mrf.mxu0
  %v268 = vadd.f32 %v147, %v267
  %v269 = vpop.f32.mrf.mxu0
  %v270 = vadd.f32 %v152, %v269
  %271 = vdwg.mxu0
  %v272 = vmax.f32 %v233, 0.0
  %v273 = vmax.f32 %v235, 0.0
  %v274 = vmax.f32 %v238, 0.0
  %v275 = vmax.f32 %v240, 0.0
  %v276 = vmax.f32 %v243, 0.0
  %v277 = vmax.f32 %v245, 0.0
  %v278 = vmax.f32 %v248, 0.0
  %v279 = vmax.f32 %v250, 0.0
  %v280 = vmax.f32 %v253, 0.0
  %v281 = vmax.f32 %v255, 0.0
  %v282 = vmax.f32 %v258, 0.0
  %v283 = vmax.f32 %v260, 0.0
  %v284 = vmax.f32 %v263, 0.0
  %v285 = vmax.f32 %v265, 0.0
  %v286 = vmax.f32 %v268, 0.0
  %v287 = vmax.f32 %v270, 0.0
  %v288 = vld [vmem:[%s3] sm:$0xf]
  %v289 = vpack.c.bf16 %v273, %v272
  %v290 = vpack.c.bf16 %v275, %v274
  %v291 = vpack.c.bf16 %v277, %v276
  %v292 = vpack.c.bf16 %v279, %v278
  %v293 = vpack.c.bf16 %v281, %v280
  %v294 = vpack.c.bf16 %v283, %v282
  %v295 = vpack.c.bf16 %v285, %v284
  %v296 = vpack.c.bf16 %v287, %v286
  %v297 = vld [vmem:[%s4] sm:$0xff]
  %299 = vset.pattern.permute.xlu0 0
  %300 = vperm.xlu0 %299, %v297
  %v301 = vpop.permute.xlu0 %300
  %303 = vmatpush.bf16.msra.mxu0 %v296
  %304 = vmatpush.bf16.msra.mxu0 %v295
  %305 = vmatpush.bf16.msra.mxu0 %v294
  %306 = vmatpush.bf16.msra.mxu0 %v293
  %307 = vmatpush.bf16.msra.mxu0 %v292
  %308 = vmatpush.bf16.msra.mxu0 %v291
  %309 = vmatpush.bf16.msra.mxu0 %v290
  %310 = vmatpush.bf16.msra.mxu0 %v289
  %311 = vmatmul.bf16.gmra.mxu0 %v288
  %v312 = vpop.f32.mrf.mxu0
  %v313 = vadd.f32 %v301, %v312
  %v314 = vpop.f32.mrf.mxu0
  %315 = vdwg.mxu0
  %vm316 = vcmask 15360
  %317 = vst.msk [vmem:[%s5] sm:$0xff] %vm316, %v313
  // Predicated region
  $region22: #{tpu_custom_call.1} parent=0 // pred_check
    _
  $region23: #{tpu_custom_call.1} parent=0 // pred_check_branch
    %319 = sbr.rel (0) target = $region25
  $region24: #{tpu_custom_call.1} parent=0 // pred_region
    _
  $region25: #{tpu_custom_call.1} parent=0 // pred_fallthru
    _
  // Predicated region
  $region26: #{tpu_custom_call.1} parent=0 // pred_check
    _
  $region27: #{tpu_custom_call.1} parent=0 // pred_check_branch
    %321 = sbr.rel (0) target = $region29
  $region28: #{tpu_custom_call.1} parent=0 // pred_region
    _
  $region29: #{tpu_custom_call.1} parent=0 // pred_fallthru
    _

</llo_original>
